<compile_context>
chip_gen: v6e
topology: v6e:2x2x1
jax: 0.10.0
libtpu: 0.0.40
codegen_flags: <defaults>
</compile_context>

<pallas_src>
import functools
import math

import jax
import jax.numpy as jnp
from jax.experimental import pallas as pl
from jax.experimental.pallas import tpu as pltpu

P = 128          # lane-dense padded width for hidden / ffn / classes
VEC_ROWS = 16    # packed small vectors, padded to a sublane multiple
MAX_BBLK = 64    # cap on batch rows per grid step (bounds the (bblk, bblk*S) score tile)
# packed row order: bq bk bv bo g1 be1 b1 b2 g2 be2 bc (rows 11..15 unused)
VEC_NAMES = ('bq', 'bk', 'bv', 'bo', 'g1', 'be1', 'b1', 'b2', 'g2', 'be2', 'bc')


def _gelu(x):
    c = math.sqrt(2.0 / math.pi)
    return 0.5 * x * (1.0 + jnp.tanh(c * (x + 0.044715 * x * x * x)))


def _layernorm_masked(h, gamma, beta, n_valid, eps=1e-5):
    """Two-pass LayerNorm over the first n_valid lanes of a P-wide row.

    Padded lanes of h / gamma / beta are zero; a lane mask keeps the centered
    values zero there too, so sums over the full lane axis divided by n_valid
    reproduce the statistics of the logical hidden dim exactly (no single-pass
    E[x^2]-E[x]^2 cancellation) and padded outputs stay zero.
    """
    lane = jax.lax.broadcasted_iota(jnp.int32, h.shape, 1)
    valid = lane < n_valid
    inv_n = 1.0 / float(n_valid)
    mean = jnp.sum(jnp.where(valid, h, 0.0), axis=-1, keepdims=True) * inv_n
    diff = jnp.where(valid, h - mean, 0.0)
    var = jnp.sum(diff * diff, axis=-1, keepdims=True) * inv_n
    return diff * jax.lax.rsqrt(var + eps) * gamma + beta


def finetune_kernel(x2d_ref, xcls_ref, wq_ref, wkv_ref, wo_ref, w1_ref,
                    w2_ref, wc_ref, vecs_ref, out_ref, *, hidden, seq):
    # x2d_ref : (bblk*S, H) bf16 -- all token rows of this batch block (unpadded lanes)
    # xcls_ref: (bblk, P)   f32  -- lane-padded [CLS] rows of this block
    # weights : bf16, zero-padded lane-dense; vecs: (VEC_ROWS, P) f32
    x2d = x2d_ref[...]
    x_cls = xcls_ref[...]
    vecs = vecs_ref[...]
    bq, bk, bv, bo = vecs[0:1], vecs[1:2], vecs[2:3], vecs[3:4]
    g1, be1 = vecs[4:5], vecs[5:6]
    b1, b2 = vecs[6:7], vecs[7:8]
    g2, be2 = vecs[8:9], vecs[9:10]
    bc = vecs[10:11]

    # Fused K/V projection for every token row of the batch block: one MXU op
    # contracting directly over the unpadded hidden dim.
    kv = jnp.dot(x2d, wkv_ref[...], preferred_element_type=jnp.float32)  # (bblk*S, 2P)
    k = kv[:, :P] + bk                                                    # (bblk*S, P)
    v = kv[:, P:] + bv                                                    # (bblk*S, P)

    # Q only for the bblk [CLS] rows; everything downstream is [CLS]-only.
    q = jnp.dot(x_cls.astype(jnp.bfloat16), wq_ref[...],
                preferred_element_type=jnp.float32) + bq                  # (bblk, P)

    # One batched score matmul for the whole block; off-(block-)diagonal batch
    # entries are masked to a large negative before the softmax.
    # TODO(synk): no padded-token attention mask (matches the synthetic
    # encoder; a real BERT forward would also mask padding tokens here).
    scale = 1.0 / math.sqrt(hidden)
    scores = jax.lax.dot_general(
        q.astype(jnp.bfloat16), k.astype(jnp.bfloat16),
        (((1,), (1,)), ((), ())),
        preferred_element_type=jnp.float32) * scale                       # (bblk, bblk*S)
    row = jax.lax.broadcasted_iota(jnp.int32, scores.shape, 0)
    col = jax.lax.broadcasted_iota(jnp.int32, scores.shape, 1)
    same_batch = (col >= row * seq) & (col < row * seq + seq)
    scores = jnp.where(same_batch, scores, -1e30)

    m = jnp.max(scores, axis=-1, keepdims=True)
    p = jnp.exp(scores - m)              # bf16 cast below caps accuracy ~1e-2
    denom = jnp.sum(p, axis=-1, keepdims=True)
    ctx = jnp.dot(p.astype(jnp.bfloat16), v.astype(jnp.bfloat16),
                  preferred_element_type=jnp.float32)                     # (bblk, P)
    ctx = ctx / denom                    # exact divide on a tiny (bblk, 1) factor

    attn = jnp.dot(ctx.astype(jnp.bfloat16), wo_ref[...],
                   preferred_element_type=jnp.float32) + bo               # (bblk, P)

    h1 = _layernorm_masked(x_cls + attn, g1, be1, hidden)

    # Feed-forward on the bblk [CLS] rows.
    ff = jnp.dot(h1.astype(jnp.bfloat16), w1_ref[...],
                 preferred_element_type=jnp.float32) + b1                 # (bblk, P)
    ff = _gelu(ff)
    ff = jnp.dot(ff.astype(jnp.bfloat16), w2_ref[...],
                 preferred_element_type=jnp.float32) + b2                 # (bblk, P)

    h2 = _layernorm_masked(h1 + ff, g2, be2, hidden)

    # New classification head (the FineTuneModel Linear), padded to 128 lanes.
    logits = jnp.dot(h2.astype(jnp.bfloat16), wc_ref[...],
                     preferred_element_type=jnp.float32) + bc             # (bblk, P)

    # Lane-dense, sublane-aligned full-block store (no broadcast slab).
    out_ref[...] = logits.astype(out_ref.dtype)


def init_params(key, vocab=100, seg_types=2, max_pos=16,
                hidden_size=32, ffn_size=64, num_classes=4):
    ks = jax.random.split(key, 21)

    def dense(k, shape, scale=0.02):
        return (scale * jax.random.normal(k, shape)).astype(jnp.float32)

    H, F, C = hidden_size, ffn_size, num_classes
    return dict(
        tok_emb=dense(ks[0], (vocab, H)),
        seg_emb=dense(ks[1], (seg_types, H)),
        pos_emb=dense(ks[2], (max_pos, H)),
        wq=dense(ks[3], (H, H)), bq=dense(ks[4], (H,)),
        wk=dense(ks[5], (H, H)), bk=dense(ks[6], (H,)),
        wv=dense(ks[7], (H, H)), bv=dense(ks[8], (H,)),
        wo=dense(ks[9], (H, H)), bo=dense(ks[10], (H,)),
        g1=1.0 + dense(ks[11], (H,)), be1=dense(ks[12], (H,)),
        w1=dense(ks[13], (H, F)), b1=dense(ks[14], (F,)),
        w2=dense(ks[15], (F, H)), b2=dense(ks[16], (H,)),
        g2=1.0 + dense(ks[17], (H,)), be2=dense(ks[18], (H,)),
        # freshly-initialized classification layer from FineTuneModel
        wc=dense(ks[19], (H, C)), bc=dense(ks[20], (C,)),
    )


def _pad_mat(w, rows, cols, dtype):
    out = jnp.zeros((rows, cols), jnp.float32).at[:w.shape[0], :w.shape[1]].set(w)
    return out.astype(dtype)


def _pad_vec(v, n):
    return jnp.zeros((n,), jnp.float32).at[:v.shape[0]].set(v.astype(jnp.float32))


def pack_params(params):
    """One-time packing of padded bf16 weights + the (16,128) bias/LN slab.

    Done once, outside the per-call forward, so no padding / concatenation
    work sits in front of the kernel on every invocation.
    """
    H = params['wq'].shape[0]
    F = params['w1'].shape[1]
    C = params['wc'].shape[1]
    # TODO(synk): single-tile weights assume H, F, C <= 128; real BERT sizes
    # (H=768) would need K/N tiling loops inside the kernel.
    assert H <= P and F <= P and C <= P
    return dict(
        tok_emb=params['tok_emb'], seg_emb=params['seg_emb'],
        pos_emb=params['pos_emb'],
        wq=_pad_mat(params['wq'], P, P, jnp.bfloat16),
        # Fused K/V projection contracting over the UNPADDED hidden dim (H
        # rows), so the full sequence never needs a lane-padded HBM copy.
        wkv=jnp.concatenate([_pad_mat(params['wk'], H, P, jnp.bfloat16),
                             _pad_mat(params['wv'], H, P, jnp.bfloat16)], axis=1),
        wo=_pad_mat(params['wo'], P, P, jnp.bfloat16),
        w1=_pad_mat(params['w1'], P, P, jnp.bfloat16),
        w2=_pad_mat(params['w2'], P, P, jnp.bfloat16),
        wc=_pad_mat(params['wc'], P, P, jnp.bfloat16),
        vecs=jnp.pad(jnp.stack([_pad_vec(params[n], P) for n in VEC_NAMES]),
                     ((0, VEC_ROWS - len(VEC_NAMES)), (0, 0))),
    )


def _round_up(n, m):
    return ((n + m - 1) // m) * m


@functools.partial(jax.jit, static_argnames=('num_classes',))
def finetune_forward(packed, sequence, segment, *, num_classes):
    """Equivalent of FineTuneModel.forward((sequence, segment))."""
    B, S = sequence.shape
    H = packed['tok_emb'].shape[1]

    # Embedding-table gathers are data-dependent lookups; kept as JAX glue.
    x = (packed['tok_emb'][sequence]
         + packed['seg_emb'][segment]
         + packed['pos_emb'][None, :S, :]).astype(jnp.float32)        # (B, S, H)

    # Batch blocking: bblk batch elements per grid step, sublane-aligned (x8).
    # Small batches collapse to ONE grid step (kills per-step overhead on
    # v5e/v6e); larger batches split into >=2 parallel blocks so v7x's second
    # TensorCore gets work.  bblk is capped so the (bblk, bblk*S) score tile
    # and per-step VMEM stay small on every generation.
    if B <= 8:
        bblk = 8
    else:
        bblk = min(MAX_BBLK, _round_up(-(-B // 2), 8))
    num_blocks = -(-B // bblk)
    b_pad = num_blocks * bblk

    x = jnp.pad(x, ((0, b_pad - B), (0, 0), (0, 0)))                  # (Bpad, S, H)
    # Lane-padded [CLS] rows only (tiny); the full sequence goes to the kernel
    # unpadded -- no 4x lane-padded HBM copy of x.
    x_cls = jnp.pad(x[:, 0, :], ((0, 0), (0, P - H)))                 # (Bpad, P) f32
    x2d = x.reshape(b_pad * S, H).astype(jnp.bfloat16)                # (Bpad*S, H)

    kernel = functools.partial(finetune_kernel, hidden=H, seq=S)

    out = pl.pallas_call(
        kernel,
        out_shape=jax.ShapeDtypeStruct((b_pad, P), jnp.float32),
        grid=(num_blocks,),
        in_specs=[
            pl.BlockSpec((bblk * S, H), lambda g: (g, 0)),            # x (token rows)
            pl.BlockSpec((bblk, P), lambda g: (g, 0)),                # [CLS] rows
            pl.BlockSpec((P, P), lambda g: (0, 0)),                   # wq
            pl.BlockSpec((H, 2 * P), lambda g: (0, 0)),               # wkv (fused)
            pl.BlockSpec((P, P), lambda g: (0, 0)),                   # wo
            pl.BlockSpec((P, P), lambda g: (0, 0)),                   # w1
            pl.BlockSpec((P, P), lambda g: (0, 0)),                   # w2
            pl.BlockSpec((P, P), lambda g: (0, 0)),                   # wc
            pl.BlockSpec((VEC_ROWS, P), lambda g: (0, 0)),            # packed vecs
        ],
        out_specs=pl.BlockSpec((bblk, P), lambda g: (g, 0)),
        compiler_params=pltpu.CompilerParams(
            dimension_semantics=("parallel",)),
    )(x2d, x_cls, packed['wq'], packed['wkv'], packed['wo'],
      packed['w1'], packed['w2'], packed['wc'], packed['vecs'])

    return out[:B, :num_classes]                                      # (B, C)


def reference_forward(params, sequence, segment):
    """Pure-JAX f32 reference of the synthetic encoder + new head."""
    S = sequence.shape[1]
    x = (params['tok_emb'][sequence] + params['seg_emb'][segment]
         + params['pos_emb'][None, :S, :]).astype(jnp.float32)
    H = x.shape[-1]
    scale = 1.0 / math.sqrt(H)
    q = jnp.einsum('bsh,hd->bsd', x, params['wq']) + params['bq']
    k = jnp.einsum('bsh,hd->bsd', x, params['wk']) + params['bk']
    v = jnp.einsum('bsh,hd->bsd', x, params['wv']) + params['bv']
    s = jnp.einsum('bqh,bkh->bqk', q, k) * scale
    p = jax.nn.softmax(s, axis=-1)
    attn = jnp.einsum('bqk,bkh->bqh', p, v)
    attn = jnp.einsum('bsh,hd->bsd', attn, params['wo']) + params['bo']

    def ln(h, g, b, eps=1e-5):
        mu = jnp.mean(h, -1, keepdims=True)
        var = jnp.mean((h - mu) ** 2, -1, keepdims=True)
        return (h - mu) * jax.lax.rsqrt(var + eps) * g + b

    h1 = ln(x + attn, params['g1'], params['be1'])
    ff = _gelu(jnp.einsum('bsh,hf->bsf', h1, params['w1']) + params['b1'])
    ff = jnp.einsum('bsf,fh->bsh', ff, params['w2']) + params['b2']
    h2 = ln(h1 + ff, params['g2'], params['be2'])
    return h2[:, 0, :] @ params['wc'] + params['bc']


if __name__ == "__main__":
    key = jax.random.PRNGKey(0)
    k_params, k_seq = jax.random.split(key)

    B, S = 2, 8
    HIDDEN, FFN, CLASSES, VOCAB = 32, 64, 4, 100

    params = init_params(k_params, vocab=VOCAB, hidden_size=HIDDEN,
                         ffn_size=FFN, num_classes=CLASSES)
    packed = pack_params(params)   # one-time weight packing (not per forward)

    sequence = jax.random.randint(k_seq, (B, S), 0, VOCAB, dtype=jnp.int32)
    segment = jnp.concatenate(
        [jnp.zeros((B, S // 2), jnp.int32), jnp.ones((B, S // 2), jnp.int32)],
        axis=1)

    classification_outputs = finetune_forward(packed, sequence, segment,
                                              num_classes=CLASSES)
    jax.block_until_ready(classification_outputs)
    assert classification_outputs.shape == (B, CLASSES)
    assert bool(jnp.all(jnp.isfinite(classification_outputs)))

    ref = reference_forward(params, sequence, segment)
    assert jnp.allclose(classification_outputs, ref, atol=5e-2, rtol=5e-2), (
        classification_outputs, ref)
    print("KERNEL_OK")
</pallas_src>

<mosaic_0001>
module attributes {stable_mosaic.version = 11 : i64} {
  func.func @finetune_kernel(%arg0: i32, %arg1: memref<64x32xbf16, #tpu.memory_space<vmem>>, %arg2: memref<8x128xf32, #tpu.memory_space<vmem>>, %arg3: memref<128x128xbf16, #tpu.memory_space<vmem>>, %arg4: memref<32x256xbf16, #tpu.memory_space<vmem>>, %arg5: memref<128x128xbf16, #tpu.memory_space<vmem>>, %arg6: memref<128x128xbf16, #tpu.memory_space<vmem>>, %arg7: memref<128x128xbf16, #tpu.memory_space<vmem>>, %arg8: memref<128x128xbf16, #tpu.memory_space<vmem>>, %arg9: memref<16x128xf32, #tpu.memory_space<vmem>>, %arg10: memref<8x128xf32, #tpu.memory_space<vmem>>) attributes {dimension_semantics = [#tpu.dimension_semantics<parallel>], iteration_bounds = array<i64: 1>, scalar_prefetch = 0 : i64, scratch_operands = 0 : i64, tpu.core_type = #tpu.core_type<tc>, window_params = [{transform_indices = @transform_0, window_bounds = array<i64: 64, 32>}, {transform_indices = @transform_1, window_bounds = array<i64: 8, 128>}, {pipeline_mode = #tpu.pipeline_mode<synchronous>, transform_indices = @transform_2, window_bounds = array<i64: 128, 128>}, {pipeline_mode = #tpu.pipeline_mode<synchronous>, transform_indices = @transform_3, window_bounds = array<i64: 32, 256>}, {pipeline_mode = #tpu.pipeline_mode<synchronous>, transform_indices = @transform_4, window_bounds = array<i64: 128, 128>}, {pipeline_mode = #tpu.pipeline_mode<synchronous>, transform_indices = @transform_5, window_bounds = array<i64: 128, 128>}, {pipeline_mode = #tpu.pipeline_mode<synchronous>, transform_indices = @transform_6, window_bounds = array<i64: 128, 128>}, {pipeline_mode = #tpu.pipeline_mode<synchronous>, transform_indices = @transform_7, window_bounds = array<i64: 128, 128>}, {pipeline_mode = #tpu.pipeline_mode<synchronous>, transform_indices = @transform_8, window_bounds = array<i64: 16, 128>}, {transform_indices = @transform_9, window_bounds = array<i64: 8, 128>}]} {
    %c0 = arith.constant 0 : index
    %c0_0 = arith.constant 0 : index
    %0 = vector.load %arg1[%c0, %c0_0] : memref<64x32xbf16, #tpu.memory_space<vmem>>, vector<64x32xbf16>
    %c0_1 = arith.constant 0 : index
    %c0_2 = arith.constant 0 : index
    %1 = vector.load %arg2[%c0_1, %c0_2] : memref<8x128xf32, #tpu.memory_space<vmem>>, vector<8x128xf32>
    %c0_3 = arith.constant 0 : index
    %c0_4 = arith.constant 0 : index
    %2 = vector.load %arg9[%c0_3, %c0_4] : memref<16x128xf32, #tpu.memory_space<vmem>>, vector<16x128xf32>
    %3 = vector.extract_strided_slice %2 {offsets = [0, 0], sizes = [1, 128], strides = [1, 1]} : vector<16x128xf32> to vector<1x128xf32>
    %4 = vector.extract_strided_slice %2 {offsets = [1, 0], sizes = [1, 128], strides = [1, 1]} : vector<16x128xf32> to vector<1x128xf32>
    %5 = vector.extract_strided_slice %2 {offsets = [2, 0], sizes = [1, 128], strides = [1, 1]} : vector<16x128xf32> to vector<1x128xf32>
    %6 = vector.extract_strided_slice %2 {offsets = [3, 0], sizes = [1, 128], strides = [1, 1]} : vector<16x128xf32> to vector<1x128xf32>
    %7 = vector.extract_strided_slice %2 {offsets = [4, 0], sizes = [1, 128], strides = [1, 1]} : vector<16x128xf32> to vector<1x128xf32>
    %8 = vector.extract_strided_slice %2 {offsets = [5, 0], sizes = [1, 128], strides = [1, 1]} : vector<16x128xf32> to vector<1x128xf32>
    %9 = vector.extract_strided_slice %2 {offsets = [6, 0], sizes = [1, 128], strides = [1, 1]} : vector<16x128xf32> to vector<1x128xf32>
    %10 = vector.extract_strided_slice %2 {offsets = [7, 0], sizes = [1, 128], strides = [1, 1]} : vector<16x128xf32> to vector<1x128xf32>
    %11 = vector.extract_strided_slice %2 {offsets = [8, 0], sizes = [1, 128], strides = [1, 1]} : vector<16x128xf32> to vector<1x128xf32>
    %12 = vector.extract_strided_slice %2 {offsets = [9, 0], sizes = [1, 128], strides = [1, 1]} : vector<16x128xf32> to vector<1x128xf32>
    %13 = vector.extract_strided_slice %2 {offsets = [10, 0], sizes = [1, 128], strides = [1, 1]} : vector<16x128xf32> to vector<1x128xf32>
    %c0_5 = arith.constant 0 : index
    %c0_6 = arith.constant 0 : index
    %14 = vector.load %arg4[%c0_5, %c0_6] : memref<32x256xbf16, #tpu.memory_space<vmem>>, vector<32x256xbf16>
    %cst = arith.constant dense<0.000000e+00> : vector<64x256xf32>
    %15 = tpu.matmul %0, %14, %cst {dimension_numbers = #tpu.dot_dimension_numbers<[1], [0], [0], [1], [0, 0, 1, 1], [], []>} : vector<64x32xbf16>, vector<32x256xbf16>, vector<64x256xf32> -> vector<64x256xf32>
    %16 = vector.extract_strided_slice %15 {offsets = [0, 0], sizes = [64, 128], strides = [1, 1]} : vector<64x256xf32> to vector<64x128xf32>
    %17 = vector.broadcast %4 : vector<1x128xf32> to vector<64x128xf32>
    %18 = arith.addf %16, %17 : vector<64x128xf32>
    %19 = vector.extract_strided_slice %15 {offsets = [0, 128], sizes = [64, 128], strides = [1, 1]} : vector<64x256xf32> to vector<64x128xf32>
    %20 = vector.broadcast %5 : vector<1x128xf32> to vector<64x128xf32>
    %21 = arith.addf %19, %20 : vector<64x128xf32>
    %22 = arith.truncf %1 : vector<8x128xf32> to vector<8x128xbf16>
    %c0_7 = arith.constant 0 : index
    %c0_8 = arith.constant 0 : index
    %23 = vector.load %arg3[%c0_7, %c0_8] : memref<128x128xbf16, #tpu.memory_space<vmem>>, vector<128x128xbf16>
    %cst_9 = arith.constant dense<0.000000e+00> : vector<8x128xf32>
    %24 = tpu.matmul %22, %23, %cst_9 {dimension_numbers = #tpu.dot_dimension_numbers<[1], [0], [0], [1], [0, 0, 1, 1], [], []>} : vector<8x128xbf16>, vector<128x128xbf16>, vector<8x128xf32> -> vector<8x128xf32>
    %25 = vector.broadcast %3 : vector<1x128xf32> to vector<8x128xf32>
    %26 = arith.addf %24, %25 : vector<8x128xf32>
    %27 = arith.truncf %26 : vector<8x128xf32> to vector<8x128xbf16>
    %28 = arith.truncf %18 : vector<64x128xf32> to vector<64x128xbf16>
    %cst_10 = arith.constant dense<0.000000e+00> : vector<8x64xf32>
    %29 = tpu.matmul %27, %28, %cst_10 {dimension_numbers = #tpu.dot_dimension_numbers<[1], [1], [0], [0], [0, 0, 1, 0], [], []>} : vector<8x128xbf16>, vector<64x128xbf16>, vector<8x64xf32> -> vector<8x64xf32>
    %cst_11 = arith.constant 0.176776692 : f32
    %30 = vector.broadcast %cst_11 : f32 to vector<8x64xf32>
    %31 = arith.mulf %29, %30 : vector<8x64xf32>
    %32 = tpu.iota {dimensions = array<i32: 0>} : vector<8x64xi32>
    %33 = tpu.iota {dimensions = array<i32: 1>} : vector<8x64xi32>
    %c8_i32 = arith.constant 8 : i32
    %34 = vector.broadcast %c8_i32 : i32 to vector<8x64xi32>
    %35 = arith.muli %32, %34 : vector<8x64xi32>
    %36 = arith.cmpi sge, %33, %35 : vector<8x64xi32>
    %c8_i32_12 = arith.constant 8 : i32
    %37 = vector.broadcast %c8_i32_12 : i32 to vector<8x64xi32>
    %38 = arith.muli %32, %37 : vector<8x64xi32>
    %c8_i32_13 = arith.constant 8 : i32
    %39 = vector.broadcast %c8_i32_13 : i32 to vector<8x64xi32>
    %40 = arith.addi %38, %39 : vector<8x64xi32>
    %41 = arith.cmpi slt, %33, %40 : vector<8x64xi32>
    %42 = arith.andi %36, %41 : vector<8x64xi1>
    %cst_14 = arith.constant -1.000000e+30 : f32
    %43 = vector.broadcast %cst_14 : f32 to vector<8x64xf32>
    %44 = arith.select %42, %31, %43 : vector<8x64xi1>, vector<8x64xf32>
    %cst_15 = arith.constant dense<0xFF800000> : vector<8xf32>
    %45 = vector.multi_reduction <maximumf>, %44, %cst_15 [1] : vector<8x64xf32> to vector<8xf32>
    %46 = vector.shape_cast %45 : vector<8xf32> to vector<8x1xf32>
    %47 = vector.broadcast %46 : vector<8x1xf32> to vector<8x64xf32>
    %48 = arith.subf %44, %47 : vector<8x64xf32>
    %49 = math.exp %48 : vector<8x64xf32>
    %cst_16 = arith.constant dense<0.000000e+00> : vector<8xf32>
    %50 = vector.multi_reduction <add>, %49, %cst_16 [1] : vector<8x64xf32> to vector<8xf32>
    %51 = vector.shape_cast %50 : vector<8xf32> to vector<8x1xf32>
    %52 = arith.truncf %49 : vector<8x64xf32> to vector<8x64xbf16>
    %53 = arith.truncf %21 : vector<64x128xf32> to vector<64x128xbf16>
    %cst_17 = arith.constant dense<0.000000e+00> : vector<8x128xf32>
    %54 = tpu.matmul %52, %53, %cst_17 {dimension_numbers = #tpu.dot_dimension_numbers<[1], [0], [0], [1], [0, 0, 1, 1], [], []>} : vector<8x64xbf16>, vector<64x128xbf16>, vector<8x128xf32> -> vector<8x128xf32>
    %55 = vector.broadcast %51 : vector<8x1xf32> to vector<8x128xf32>
    %56 = arith.divf %54, %55 : vector<8x128xf32>
    %57 = arith.truncf %56 : vector<8x128xf32> to vector<8x128xbf16>
    %c0_18 = arith.constant 0 : index
    %c0_19 = arith.constant 0 : index
    %58 = vector.load %arg5[%c0_18, %c0_19] : memref<128x128xbf16, #tpu.memory_space<vmem>>, vector<128x128xbf16>
    %cst_20 = arith.constant dense<0.000000e+00> : vector<8x128xf32>
    %59 = tpu.matmul %57, %58, %cst_20 {dimension_numbers = #tpu.dot_dimension_numbers<[1], [0], [0], [1], [0, 0, 1, 1], [], []>} : vector<8x128xbf16>, vector<128x128xbf16>, vector<8x128xf32> -> vector<8x128xf32>
    %60 = vector.broadcast %6 : vector<1x128xf32> to vector<8x128xf32>
    %61 = arith.addf %59, %60 : vector<8x128xf32>
    %62 = arith.addf %1, %61 : vector<8x128xf32>
    %63 = tpu.iota {dimensions = array<i32: 1>} : vector<8x128xi32>
    %c32_i32 = arith.constant 32 : i32
    %64 = vector.broadcast %c32_i32 : i32 to vector<8x128xi32>
    %65 = arith.cmpi slt, %63, %64 : vector<8x128xi32>
    %cst_21 = arith.constant 0.000000e+00 : f32
    %66 = vector.broadcast %cst_21 : f32 to vector<8x128xf32>
    %67 = arith.select %65, %62, %66 : vector<8x128xi1>, vector<8x128xf32>
    %cst_22 = arith.constant dense<0.000000e+00> : vector<8xf32>
    %68 = vector.multi_reduction <add>, %67, %cst_22 [1] : vector<8x128xf32> to vector<8xf32>
    %69 = vector.shape_cast %68 : vector<8xf32> to vector<8x1xf32>
    %cst_23 = arith.constant 3.125000e-02 : f32
    %70 = vector.broadcast %cst_23 : f32 to vector<8x1xf32>
    %71 = arith.mulf %69, %70 : vector<8x1xf32>
    %72 = vector.broadcast %71 : vector<8x1xf32> to vector<8x128xf32>
    %73 = arith.subf %62, %72 : vector<8x128xf32>
    %cst_24 = arith.constant 0.000000e+00 : f32
    %74 = vector.broadcast %cst_24 : f32 to vector<8x128xf32>
    %75 = arith.select %65, %73, %74 : vector<8x128xi1>, vector<8x128xf32>
    %76 = arith.mulf %75, %75 : vector<8x128xf32>
    %cst_25 = arith.constant dense<0.000000e+00> : vector<8xf32>
    %77 = vector.multi_reduction <add>, %76, %cst_25 [1] : vector<8x128xf32> to vector<8xf32>
    %78 = vector.shape_cast %77 : vector<8xf32> to vector<8x1xf32>
    %cst_26 = arith.constant 3.125000e-02 : f32
    %79 = vector.broadcast %cst_26 : f32 to vector<8x1xf32>
    %80 = arith.mulf %78, %79 : vector<8x1xf32>
    %cst_27 = arith.constant 9.99999974E-6 : f32
    %81 = vector.broadcast %cst_27 : f32 to vector<8x1xf32>
    %82 = arith.addf %80, %81 : vector<8x1xf32>
    %83 = math.rsqrt %82 : vector<8x1xf32>
    %84 = vector.broadcast %83 : vector<8x1xf32> to vector<8x128xf32>
    %85 = arith.mulf %75, %84 : vector<8x128xf32>
    %86 = vector.broadcast %7 : vector<1x128xf32> to vector<8x128xf32>
    %87 = arith.mulf %85, %86 : vector<8x128xf32>
    %88 = vector.broadcast %8 : vector<1x128xf32> to vector<8x128xf32>
    %89 = arith.addf %87, %88 : vector<8x128xf32>
    %90 = arith.truncf %89 : vector<8x128xf32> to vector<8x128xbf16>
    %c0_28 = arith.constant 0 : index
    %c0_29 = arith.constant 0 : index
    %91 = vector.load %arg6[%c0_28, %c0_29] : memref<128x128xbf16, #tpu.memory_space<vmem>>, vector<128x128xbf16>
    %cst_30 = arith.constant dense<0.000000e+00> : vector<8x128xf32>
    %92 = tpu.matmul %90, %91, %cst_30 {dimension_numbers = #tpu.dot_dimension_numbers<[1], [0], [0], [1], [0, 0, 1, 1], [], []>} : vector<8x128xbf16>, vector<128x128xbf16>, vector<8x128xf32> -> vector<8x128xf32>
    %93 = vector.broadcast %9 : vector<1x128xf32> to vector<8x128xf32>
    %94 = arith.addf %92, %93 : vector<8x128xf32>
    %cst_31 = arith.constant 5.000000e-01 : f32
    %95 = vector.broadcast %cst_31 : f32 to vector<8x128xf32>
    %96 = arith.mulf %95, %94 : vector<8x128xf32>
    %cst_32 = arith.constant 4.471500e-02 : f32
    %97 = vector.broadcast %cst_32 : f32 to vector<8x128xf32>
    %98 = arith.mulf %97, %94 : vector<8x128xf32>
    %99 = arith.mulf %98, %94 : vector<8x128xf32>
    %100 = arith.mulf %99, %94 : vector<8x128xf32>
    %101 = arith.addf %94, %100 : vector<8x128xf32>
    %cst_33 = arith.constant 0.797884583 : f32
    %102 = vector.broadcast %cst_33 : f32 to vector<8x128xf32>
    %103 = arith.mulf %102, %101 : vector<8x128xf32>
    %104 = math.tanh %103 : vector<8x128xf32>
    %cst_34 = arith.constant 1.000000e+00 : f32
    %105 = vector.broadcast %cst_34 : f32 to vector<8x128xf32>
    %106 = arith.addf %105, %104 : vector<8x128xf32>
    %107 = arith.mulf %96, %106 : vector<8x128xf32>
    %108 = arith.truncf %107 : vector<8x128xf32> to vector<8x128xbf16>
    %c0_35 = arith.constant 0 : index
    %c0_36 = arith.constant 0 : index
    %109 = vector.load %arg7[%c0_35, %c0_36] : memref<128x128xbf16, #tpu.memory_space<vmem>>, vector<128x128xbf16>
    %cst_37 = arith.constant dense<0.000000e+00> : vector<8x128xf32>
    %110 = tpu.matmul %108, %109, %cst_37 {dimension_numbers = #tpu.dot_dimension_numbers<[1], [0], [0], [1], [0, 0, 1, 1], [], []>} : vector<8x128xbf16>, vector<128x128xbf16>, vector<8x128xf32> -> vector<8x128xf32>
    %111 = vector.broadcast %10 : vector<1x128xf32> to vector<8x128xf32>
    %112 = arith.addf %110, %111 : vector<8x128xf32>
    %113 = arith.addf %89, %112 : vector<8x128xf32>
    %114 = tpu.iota {dimensions = array<i32: 1>} : vector<8x128xi32>
    %c32_i32_38 = arith.constant 32 : i32
    %115 = vector.broadcast %c32_i32_38 : i32 to vector<8x128xi32>
    %116 = arith.cmpi slt, %114, %115 : vector<8x128xi32>
    %cst_39 = arith.constant 0.000000e+00 : f32
    %117 = vector.broadcast %cst_39 : f32 to vector<8x128xf32>
    %118 = arith.select %116, %113, %117 : vector<8x128xi1>, vector<8x128xf32>
    %cst_40 = arith.constant dense<0.000000e+00> : vector<8xf32>
    %119 = vector.multi_reduction <add>, %118, %cst_40 [1] : vector<8x128xf32> to vector<8xf32>
    %120 = vector.shape_cast %119 : vector<8xf32> to vector<8x1xf32>
    %cst_41 = arith.constant 3.125000e-02 : f32
    %121 = vector.broadcast %cst_41 : f32 to vector<8x1xf32>
    %122 = arith.mulf %120, %121 : vector<8x1xf32>
    %123 = vector.broadcast %122 : vector<8x1xf32> to vector<8x128xf32>
    %124 = arith.subf %113, %123 : vector<8x128xf32>
    %cst_42 = arith.constant 0.000000e+00 : f32
    %125 = vector.broadcast %cst_42 : f32 to vector<8x128xf32>
    %126 = arith.select %116, %124, %125 : vector<8x128xi1>, vector<8x128xf32>
    %127 = arith.mulf %126, %126 : vector<8x128xf32>
    %cst_43 = arith.constant dense<0.000000e+00> : vector<8xf32>
    %128 = vector.multi_reduction <add>, %127, %cst_43 [1] : vector<8x128xf32> to vector<8xf32>
    %129 = vector.shape_cast %128 : vector<8xf32> to vector<8x1xf32>
    %cst_44 = arith.constant 3.125000e-02 : f32
    %130 = vector.broadcast %cst_44 : f32 to vector<8x1xf32>
    %131 = arith.mulf %129, %130 : vector<8x1xf32>
    %cst_45 = arith.constant 9.99999974E-6 : f32
    %132 = vector.broadcast %cst_45 : f32 to vector<8x1xf32>
    %133 = arith.addf %131, %132 : vector<8x1xf32>
    %134 = math.rsqrt %133 : vector<8x1xf32>
    %135 = vector.broadcast %134 : vector<8x1xf32> to vector<8x128xf32>
    %136 = arith.mulf %126, %135 : vector<8x128xf32>
    %137 = vector.broadcast %11 : vector<1x128xf32> to vector<8x128xf32>
    %138 = arith.mulf %136, %137 : vector<8x128xf32>
    %139 = vector.broadcast %12 : vector<1x128xf32> to vector<8x128xf32>
    %140 = arith.addf %138, %139 : vector<8x128xf32>
    %141 = arith.truncf %140 : vector<8x128xf32> to vector<8x128xbf16>
    %c0_46 = arith.constant 0 : index
    %c0_47 = arith.constant 0 : index
    %142 = vector.load %arg8[%c0_46, %c0_47] : memref<128x128xbf16, #tpu.memory_space<vmem>>, vector<128x128xbf16>
    %cst_48 = arith.constant dense<0.000000e+00> : vector<8x128xf32>
    %143 = tpu.matmul %141, %142, %cst_48 {dimension_numbers = #tpu.dot_dimension_numbers<[1], [0], [0], [1], [0, 0, 1, 1], [], []>} : vector<8x128xbf16>, vector<128x128xbf16>, vector<8x128xf32> -> vector<8x128xf32>
    %144 = vector.broadcast %13 : vector<1x128xf32> to vector<8x128xf32>
    %145 = arith.addf %143, %144 : vector<8x128xf32>
    %c0_49 = arith.constant 0 : index
    %c0_50 = arith.constant 0 : index
    %146 = vector.load %arg10[%c0_49, %c0_50] : memref<8x128xf32, #tpu.memory_space<vmem>>, vector<8x128xf32>
    tpu.vector_store %arg10[%c0_49, %c0_50], %145 {strides = array<i32>} : memref<8x128xf32, #tpu.memory_space<vmem>>, vector<8x128xf32>,
    return
  }
  func.func @transform_0(%arg0: i32) -> (i32, i32) {
    %c0_i32 = arith.constant 0 : i32
    %c0_i32_0 = arith.constant 0 : i32
    return %arg0, %c0_i32 : i32, i32
  }
  func.func @transform_1(%arg0: i32) -> (i32, i32) {
    %c0_i32 = arith.constant 0 : i32
    %c0_i32_0 = arith.constant 0 : i32
    return %arg0, %c0_i32 : i32, i32
  }
  func.func @transform_2(%arg0: i32) -> (i32, i32) {
    %c0_i32 = arith.constant 0 : i32
    %c0_i32_0 = arith.constant 0 : i32
    %c0_i32_1 = arith.constant 0 : i32
    return %c0_i32, %c0_i32_0 : i32, i32
  }
  func.func @transform_3(%arg0: i32) -> (i32, i32) {
    %c0_i32 = arith.constant 0 : i32
    %c0_i32_0 = arith.constant 0 : i32
    %c0_i32_1 = arith.constant 0 : i32
    return %c0_i32, %c0_i32_0 : i32, i32
  }
  func.func @transform_4(%arg0: i32) -> (i32, i32) {
    %c0_i32 = arith.constant 0 : i32
    %c0_i32_0 = arith.constant 0 : i32
    %c0_i32_1 = arith.constant 0 : i32
    return %c0_i32, %c0_i32_0 : i32, i32
  }
  func.func @transform_5(%arg0: i32) -> (i32, i32) {
    %c0_i32 = arith.constant 0 : i32
    %c0_i32_0 = arith.constant 0 : i32
    %c0_i32_1 = arith.constant 0 : i32
    return %c0_i32, %c0_i32_0 : i32, i32
  }
  func.func @transform_6(%arg0: i32) -> (i32, i32) {
    %c0_i32 = arith.constant 0 : i32
    %c0_i32_0 = arith.constant 0 : i32
    %c0_i32_1 = arith.constant 0 : i32
    return %c0_i32, %c0_i32_0 : i32, i32
  }
  func.func @transform_7(%arg0: i32) -> (i32, i32) {
    %c0_i32 = arith.constant 0 : i32
    %c0_i32_0 = arith.constant 0 : i32
    %c0_i32_1 = arith.constant 0 : i32
    return %c0_i32, %c0_i32_0 : i32, i32
  }
  func.func @transform_8(%arg0: i32) -> (i32, i32) {
    %c0_i32 = arith.constant 0 : i32
    %c0_i32_0 = arith.constant 0 : i32
    %c0_i32_1 = arith.constant 0 : i32
    return %c0_i32, %c0_i32_0 : i32, i32
  }
  func.func @transform_9(%arg0: i32) -> (i32, i32) {
    %c0_i32 = arith.constant 0 : i32
    %c0_i32_0 = arith.constant 0 : i32
    return %arg0, %c0_i32 : i32, i32
  }
}

</mosaic_0001>

<llo_original>
// kernel: finetune_forward.1
$region0: #{finetune_forward.1}
  #allocation0 [shape = 'u32[]', space=smem, size = 0x4, offset = 0x4, fixed_abs, tag = 'smem constant byte address 0x4 - core index']
  #allocation1 [shape = 'u32[144,128]{1,0:T(1,128)}', space=vmem, size = 0x12000, scoped, tag = 'internal scratch']
  %s0 = inlined_call_operand.vmem [shape: bf16[64,32], index: 0, kind: input, shape index: {}]
  %s1 = inlined_call_operand.vmem [shape: f32[8,128], index: 1, kind: input, shape index: {}]
  %s2 = inlined_call_operand.vmem [shape: bf16[128,128], index: 2, kind: input, shape index: {}]
  %s3 = inlined_call_operand.vmem [shape: bf16[32,256], index: 3, kind: input, shape index: {}]
  %s4 = inlined_call_operand.vmem [shape: bf16[128,128], index: 4, kind: input, shape index: {}]
  %s5 = inlined_call_operand.vmem [shape: bf16[128,128], index: 5, kind: input, shape index: {}]
  %s6 = inlined_call_operand.vmem [shape: bf16[128,128], index: 6, kind: input, shape index: {}]
  %s7 = inlined_call_operand.vmem [shape: bf16[128,128], index: 7, kind: input, shape index: {}]
  %s8 = inlined_call_operand.vmem [shape: f32[16,128], index: 8, kind: input, shape index: {}]
  %s9 = inlined_call_operand.vmem [shape: f32[8,128], index: 9, kind: output, shape index: {}]
  %s10 = sld [smem:[#allocation0]]
  $region46: #{finetune_forward.1} parent=0
    _
  %s12 = ssub.s32 1, %s10
  %s13 = scalar_select 0, %s12, %s10
  // Predicated region
  $region2: #{finetune_forward.1} parent=0 // pred_check
    _
  $region3: #{finetune_forward.1} parent=0 // pred_check_branch
    %15 = sbr.rel (0) target = $region5
  $region4: #{finetune_forward.1} parent=0 // pred_region
    _
  $region5: #{finetune_forward.1} parent=0 // pred_fallthru
    _
  // Predicated region
  $region6: #{finetune_forward.1} parent=0 // pred_check
    _
  $region7: #{finetune_forward.1} parent=0 // pred_check_branch
    %17 = sbr.rel (0) target = $region9
  $region8: #{finetune_forward.1} parent=0 // pred_region
    _
  $region9: #{finetune_forward.1} parent=0 // pred_fallthru
    _
  // Predicated region
  $region10: #{finetune_forward.1} parent=0 // pred_check
    _
  $region11: #{finetune_forward.1} parent=0 // pred_check_branch
    %19 = sbr.rel (0) target = $region13
  $region12: #{finetune_forward.1} parent=0 // pred_region
    _
  $region13: #{finetune_forward.1} parent=0 // pred_fallthru
    _
  // Predicated region
  $region14: #{finetune_forward.1} parent=0 // pred_check
    _
  $region15: #{finetune_forward.1} parent=0 // pred_check_branch
    %21 = sbr.rel (0) target = $region17
  $region16: #{finetune_forward.1} parent=0 // pred_region
    _
  $region17: #{finetune_forward.1} parent=0 // pred_fallthru
    _
  // Predicated region
  $region18: #{finetune_forward.1} parent=0 // pred_check
    _
  $region19: #{finetune_forward.1} parent=0 // pred_check_branch
    %23 = sbr.rel (0) target = $region21
  $region20: #{finetune_forward.1} parent=0 // pred_region
    _
  $region21: #{finetune_forward.1} parent=0 // pred_fallthru
    _
  // Predicated region
  $region22: #{finetune_forward.1} parent=0 // pred_check
    _
  $region23: #{finetune_forward.1} parent=0 // pred_check_branch
    %25 = sbr.rel (0) target = $region25
  $region24: #{finetune_forward.1} parent=0 // pred_region
    _
  $region25: #{finetune_forward.1} parent=0 // pred_fallthru
    _
  // Predicated region
  $region26: #{finetune_forward.1} parent=0 // pred_check
    _
  $region27: #{finetune_forward.1} parent=0 // pred_check_branch
    %27 = sbr.rel (0) target = $region29
  $region28: #{finetune_forward.1} parent=0 // pred_region
    _
  $region29: #{finetune_forward.1} parent=0 // pred_fallthru
    _
  // Predicated region
  $region30: #{finetune_forward.1} parent=0 // pred_check
    _
  $region31: #{finetune_forward.1} parent=0 // pred_check_branch
    %29 = sbr.rel (0) target = $region33
  $region32: #{finetune_forward.1} parent=0 // pred_region
    _
  $region33: #{finetune_forward.1} parent=0 // pred_fallthru
    _
  // Predicated region
  $region34: #{finetune_forward.1} parent=0 // pred_check
    _
  $region35: #{finetune_forward.1} parent=0 // pred_check_branch
    %31 = sbr.rel (0) target = $region37
  $region36: #{finetune_forward.1} parent=0 // pred_region
    _
  $region37: #{finetune_forward.1} parent=0 // pred_fallthru
    _
  %v33 = vld [vmem:[%s0] sm:$0xf]
  %v34 = vld [vmem:[%s0 + $0x4] sm:$0xf]
  %v35 = vld [vmem:[%s0 + $0x8] sm:$0xf]
  %v36 = vld [vmem:[%s0 + $0xc] sm:$0xf]
  %v37 = vld [vmem:[%s0 + $0x10] sm:$0xf]
  %v38 = vld [vmem:[%s0 + $0x14] sm:$0xf]
  %v39 = vld [vmem:[%s0 + $0x18] sm:$0xf]
  %v40 = vld [vmem:[%s0 + $0x1c] sm:$0xf]
  %v41 = vld [vmem:[%s1] sm:$0xff]
  %v42 = vld [vmem:[%s8] sm:$0xff]
  %v43 = vld [vmem:[%s8 + $0x8] sm:$0xff]
  %v44 = vld [vmem:[%s3] sm:$0xff]
  %v45 = vld [vmem:[%s3 + $0x8] sm:$0xff]
  %v46 = vld [vmem:[%s3 + $0x10] sm:$0xff]
  %v47 = vld [vmem:[%s3 + $0x18] sm:$0xff]
  %v56 = vunpack.c.l.b16 %v33
  %v57 = vunpack.c.l.b16 %v34
  %v58 = vunpack.c.l.b16 %v35
  %v59 = vunpack.c.l.b16 %v36
  %v60 = vunpack.c.l.b16 %v37
  %v61 = vunpack.c.l.b16 %v38
  %v62 = vunpack.c.l.b16 %v39
  %v63 = vunpack.c.l.b16 %v40
  %v64 = vpack.c.b16 %v57, %v56
  %v65 = vpack.c.b16 %v59, %v58
  %v66 = vpack.c.b16 %v61, %v60
  %v67 = vpack.c.b16 %v63, %v62
  %v72 = vunpack.c.l.b16 %v44
  %v73 = vunpack.c.h.b16 %v44
  %v74 = vunpack.c.l.b16 %v45
  %v75 = vunpack.c.h.b16 %v45
  %v76 = vunpack.c.l.b16 %v46
  %v77 = vunpack.c.h.b16 %v46
  %v78 = vunpack.c.l.b16 %v47
  %v79 = vunpack.c.h.b16 %v47
  %v80 = vpack.c.b16 %v74, %v72
  %v81 = vpack.c.b16 %v75, %v73
  %v82 = vpack.c.b16 %v78, %v76
  %v83 = vpack.c.b16 %v79, %v77
  %vm88 = vcmask 261120
  %v90 = vsel %vm88, %v64, 0
  %v93 = vsel %vm88, %v65, 0
  %v96 = vsel %vm88, %v66, 0
  %v99 = vsel %vm88, %v67, 0
  %101 = vmatprep.subr.bf16.mxu0 0
  %102 = vmatpush1.bf16.msra.mxu0 0
  %103 = vmatprep.subr.bf16.mxu0 0
  %104 = vmatpush1.bf16.msra.mxu0 0
  %105 = vmatprep.subr.bf16.mxu0 0
  %106 = vmatpush1.bf16.msra.mxu0 0
  %107 = vmatprep.subr.bf16.mxu0 0
  %108 = vmatpush1.bf16.msra.mxu0 0
  %109 = vmatprep.subr.bf16.mxu0 0
  %110 = vmatpush1.bf16.msra.mxu0 0
  %111 = vmatprep.subr.bf16.mxu0 0
  %112 = vmatpush1.bf16.msra.mxu0 0
  %113 = vmatprep.subr.bf16.mxu0 %v83
  %114 = vmatpush1.bf16.msra.mxu0 %v82
  %115 = vmatprep.subr.bf16.mxu0 %v81
  %116 = vmatpush1.bf16.msra.mxu0 %v80
  %117 = vmatprep.subr.bf16.mxu0 0
  %118 = vmatpush2.bf16.msra.mxu0 0
  %119 = vmatprep.subr.bf16.mxu0 0
  %120 = vmatpush2.bf16.msra.mxu0 0
  %121 = vmatprep.subr.bf16.mxu0 0
  %122 = vmatpush2.bf16.msra.mxu0 0
  %123 = vmatprep.subr.bf16.mxu0 0
  %124 = vmatpush2.bf16.msra.mxu0 0
  %125 = vmatprep.subr.bf16.mxu0 0
  %126 = vmatpush2.bf16.msra.mxu0 0
  %127 = vmatprep.subr.bf16.mxu0 0
  %128 = vmatpush2.bf16.msra.mxu0 0
  %129 = vmatprep.subr.bf16.mxu0 0
  %130 = vmatpush2.bf16.msra.mxu0 0
  %131 = vmatprep.subr.bf16.mxu0 0
  %132 = vmatpush2.bf16.msra.mxu0 0
  %133 = vmatprep.mubr.bf16.mxu0 0
  %134 = vmatmul.mubr.bf16.gmra.mxu0 %v90
  %v135 = vpop.f32.mrf.mxu0
  %v136 = vadd.f32 0.0, %v135
  %v137 = vpop.f32.mrf.mxu0
  %v138 = vadd.f32 0.0, %v137
  %v139 = vpop.f32.mrf.mxu0
  %v140 = vadd.f32 0.0, %v139
  %v141 = vpop.f32.mrf.mxu0
  %v142 = vadd.f32 0.0, %v141
  %143 = vmatprep.mubr.bf16.mxu0 0
  %144 = vmatmul.mubr.bf16.gmra.mxu0 %v93
  %v145 = vpop.f32.mrf.mxu0
  %v146 = vadd.f32 0.0, %v145
  %v147 = vpop.f32.mrf.mxu0
  %v148 = vadd.f32 0.0, %v147
  %v149 = vpop.f32.mrf.mxu0
  %v150 = vadd.f32 0.0, %v149
  %v151 = vpop.f32.mrf.mxu0
  %v152 = vadd.f32 0.0, %v151
  %153 = vmatprep.mubr.bf16.mxu0 0
  %154 = vmatmul.mubr.bf16.gmra.mxu0 %v96
  %v155 = vpop.f32.mrf.mxu0
  %v156 = vadd.f32 0.0, %v155
  %v157 = vpop.f32.mrf.mxu0
  %v158 = vadd.f32 0.0, %v157
  %v159 = vpop.f32.mrf.mxu0
  %v160 = vadd.f32 0.0, %v159
  %v161 = vpop.f32.mrf.mxu0
  %v162 = vadd.f32 0.0, %v161
  %163 = vmatprep.mubr.bf16.mxu0 0
  %164 = vmatmul.mubr.bf16.gmra.mxu0 %v99
  %v165 = vpop.f32.mrf.mxu0
  %v166 = vadd.f32 0.0, %v165
  %v167 = vpop.f32.mrf.mxu0
  %v168 = vadd.f32 0.0, %v167
  %v169 = vpop.f32.mrf.mxu0
  %v170 = vadd.f32 0.0, %v169
  %v171 = vpop.f32.mrf.mxu0
  %v172 = vadd.f32 0.0, %v171
  %173 = vdwg.mxu0
  %v174 = vlaneseq
  %v175 = vshrl.u32 %v174, 7
  %v176 = vsub.s32 1, %v175
  %v177 = vrot.slane %v42, %v176
  %v178 = vadd.f32 %v136, %v177
  %v179 = vadd.f32 %v140, %v177
  %v180 = vadd.f32 %v146, %v177
  %v181 = vadd.f32 %v150, %v177
  %v182 = vadd.f32 %v156, %v177
  %v183 = vadd.f32 %v160, %v177
  %v184 = vadd.f32 %v166, %v177
  %v185 = vadd.f32 %v170, %v177
  %v186 = vlaneseq
  %v187 = vshrl.u32 %v186, 7
  %v188 = vsub.s32 2, %v187
  %v189 = vrot.slane %v42, %v188
  %v190 = vadd.f32 %v138, %v189
  %v191 = vadd.f32 %v142, %v189
  %v192 = vadd.f32 %v148, %v189
  %v193 = vadd.f32 %v152, %v189
  %v194 = vadd.f32 %v158, %v189
  %v195 = vadd.f32 %v162, %v189
  %v196 = vadd.f32 %v168, %v189
  %v197 = vadd.f32 %v172, %v189
  %v198 = vpack.c.bf16 %v41, %v41
  %v199 = vld [vmem:[%s2] sm:$0xf]
  %v200 = vld [vmem:[%s2 + $0x4] sm:$0xf]
  %v201 = vld [vmem:[%s2 + $0x8] sm:$0xf]
  %v202 = vld [vmem:[%s2 + $0xc] sm:$0xf]
  %v203 = vld [vmem:[%s2 + $0x10] sm:$0xf]
  %v204 = vld [vmem:[%s2 + $0x14] sm:$0xf]
  %v205 = vld [vmem:[%s2 + $0x18] sm:$0xf]
  %v206 = vld [vmem:[%s2 + $0x1c] sm:$0xf]
  %v207 = vld [vmem:[%s2 + $0x20] sm:$0xf]
  %v208 = vld [vmem:[%s2 + $0x24] sm:$0xf]
  %v209 = vld [vmem:[%s2 + $0x28] sm:$0xf]
  %v210 = vld [vmem:[%s2 + $0x2c] sm:$0xf]
  %v211 = vld [vmem:[%s2 + $0x30] sm:$0xf]
  %v212 = vld [vmem:[%s2 + $0x34] sm:$0xf]
  %v213 = vld [vmem:[%s2 + $0x38] sm:$0xf]
  %v214 = vld [vmem:[%s2 + $0x3c] sm:$0xf]
  %v215 = vlaneseq
  %v216 = vshrl.u32 %v215, 7
  %v217 = vsub.s32 0, %v216
  %v218 = vrot.slane %v42, %v217
  %v235 = vunpack.c.l.b16 %v199
  %v236 = vunpack.c.l.b16 %v200
  %v237 = vunpack.c.l.b16 %v201
  %v238 = vunpack.c.l.b16 %v202
  %v239 = vunpack.c.l.b16 %v203
  %v240 = vunpack.c.l.b16 %v204
  %v241 = vunpack.c.l.b16 %v205
  %v242 = vunpack.c.l.b16 %v206
  %v243 = vunpack.c.l.b16 %v207
  %v244 = vunpack.c.l.b16 %v208
  %v245 = vunpack.c.l.b16 %v209
  %v246 = vunpack.c.l.b16 %v210
  %v247 = vunpack.c.l.b16 %v211
  %v248 = vunpack.c.l.b16 %v212
  %v249 = vunpack.c.l.b16 %v213
  %v250 = vunpack.c.l.b16 %v214
  %v251 = vpack.c.b16 %v236, %v235
  %v252 = vpack.c.b16 %v238, %v237
  %v253 = vpack.c.b16 %v240, %v239
  %v254 = vpack.c.b16 %v242, %v241
  %v255 = vpack.c.b16 %v244, %v243
  %v256 = vpack.c.b16 %v246, %v245
  %v257 = vpack.c.b16 %v248, %v247
  %v258 = vpack.c.b16 %v250, %v249
  %267 = vmatprep.subr.bf16.mxu0 0
  %268 = vmatpush1.bf16.msra.mxu0 %v258
  %269 = vmatprep.subr.bf16.mxu0 0
  %270 = vmatpush1.bf16.msra.mxu0 %v257
  %271 = vmatprep.subr.bf16.mxu0 0
  %272 = vmatpush1.bf16.msra.mxu0 %v256
  %273 = vmatprep.subr.bf16.mxu0 0
  %274 = vmatpush1.bf16.msra.mxu0 %v255
  %275 = vmatprep.subr.bf16.mxu0 0
  %276 = vmatpush1.bf16.msra.mxu0 %v254
  %277 = vmatprep.subr.bf16.mxu0 0
  %278 = vmatpush1.bf16.msra.mxu0 %v253
  %279 = vmatprep.subr.bf16.mxu0 0
  %280 = vmatpush1.bf16.msra.mxu0 %v252
  %281 = vmatprep.subr.bf16.mxu0 0
  %282 = vmatpush1.bf16.msra.mxu0 %v251
  %283 = vmatprep.subr.bf16.mxu0 0
  %284 = vmatpush2.bf16.msra.mxu0 0
  %285 = vmatprep.subr.bf16.mxu0 0
  %286 = vmatpush2.bf16.msra.mxu0 0
  %287 = vmatprep.subr.bf16.mxu0 0
  %288 = vmatpush2.bf16.msra.mxu0 0
  %289 = vmatprep.subr.bf16.mxu0 0
  %290 = vmatpush2.bf16.msra.mxu0 0
  %291 = vmatprep.subr.bf16.mxu0 0
  %292 = vmatpush2.bf16.msra.mxu0 0
  %293 = vmatprep.subr.bf16.mxu0 0
  %294 = vmatpush2.bf16.msra.mxu0 0
  %295 = vmatprep.subr.bf16.mxu0 0
  %296 = vmatpush2.bf16.msra.mxu0 0
  %297 = vmatprep.subr.bf16.mxu0 0
  %298 = vmatpush2.bf16.msra.mxu0 0
  %299 = vmatprep.mubr.bf16.mxu0 0
  %300 = vmatmul.mubr.bf16.gmra.mxu0 %v198
  %v301 = vpop.f32.mrf.mxu0
  %v302 = vadd.f32 %v218, %v301
  %v303 = vpop.f32.mrf.mxu0
  %v304 = vpop.f32.mrf.mxu0
  %v305 = vpop.f32.mrf.mxu0
  %306 = vdwg.mxu0
  %v307 = vpack.c.bf16 %v302, %v302
  %v308 = vpack.c.bf16 %v179, %v178
  %v309 = vpack.c.bf16 %v181, %v180
  %v310 = vpack.c.bf16 %v183, %v182
  %v311 = vpack.c.bf16 %v185, %v184
  %312 = vmatprep.subr.bf16.mxu0 0
  %313 = vmatpush1.bf16.xpose.msra.mxu0 0
  %314 = vmatprep.subr.bf16.mxu0 0
  %315 = vmatpush1.bf16.xpose.msra.mxu0 0
  %316 = vmatprep.subr.bf16.mxu0 0
  %317 = vmatpush1.bf16.xpose.msra.mxu0 0
  %318 = vmatprep.subr.bf16.mxu0 0
  %319 = vmatpush1.bf16.xpose.msra.mxu0 0
  %320 = vmatprep.subr.bf16.mxu0 0
  %321 = vmatpush1.bf16.xpose.msra.mxu0 %v311
  %322 = vmatprep.subr.bf16.mxu0 0
  %323 = vmatpush1.bf16.xpose.msra.mxu0 %v310
  %324 = vmatprep.subr.bf16.mxu0 0
  %325 = vmatpush1.bf16.xpose.msra.mxu0 %v309
  %326 = vmatprep.subr.bf16.mxu0 0
  %327 = vmatpush1.bf16.xpose.msra.mxu0 %v308
  %328 = vmatprep.subr.bf16.mxu0 0
  %329 = vmatpush2.bf16.xpose.msra.mxu0 0
  %330 = vmatprep.subr.bf16.mxu0 0
  %331 = vmatpush2.bf16.xpose.msra.mxu0 0
  %332 = vmatprep.subr.bf16.mxu0 0
  %333 = vmatpush2.bf16.xpose.msra.mxu0 0
  %334 = vmatprep.subr.bf16.mxu0 0
  %335 = vmatpush2.bf16.xpose.msra.mxu0 0
  %336 = vmatprep.subr.bf16.mxu0 0
  %337 = vmatpush2.bf16.xpose.msra.mxu0 0
  %338 = vmatprep.subr.bf16.mxu0 0
  %339 = vmatpush2.bf16.xpose.msra.mxu0 0
  %340 = vmatprep.subr.bf16.mxu0 0
  %341 = vmatpush2.bf16.xpose.msra.mxu0 0
  %342 = vmatprep.subr.bf16.mxu0 0
  %343 = vmatpush2.bf16.xpose.msra.mxu0 0
  %344 = vmatprep.mubr.bf16.mxu0 0
  %345 = vmatmul.mubr.bf16.gmra.mxu0 %v307
  %v346 = vpop.f32.mrf.mxu0
  %v347 = vadd.f32 0.0, %v346
  %v348 = vpop.f32.mrf.mxu0
  %v349 = vpop.f32.mrf.mxu0
  %v350 = vpop.f32.mrf.mxu0
  %351 = vdwg.mxu0
  %v352 = vmul.f32 %v347, 0.17677669
  %v353 = vlaneseq
  %v354 = vshrl.u32 %v353, 7
  %v355 = vlaneseq
  %v356 = vand.u32 %v355, 127
  %v357 = vmul.u32 %v354, 8
  %vm358 = vcmp.ge.s32.totalorder %v356, %v357
  %v359 = vadd.s32 %v357, 8
  %vm360 = vcmp.lt.s32.totalorder %v356, %v359
  %vm361 = vmand %vm358, %vm360
  %v362 = vsel %vm361, %v352, -1e+30
  %vm363 = vcmask 523264
  %v364 = vsel %vm363, %v362, -inf
  %365 = vmax.xlane.f32.xlu0 %v364
  %v366 = vpop.xlane.xlu0 %365
  %v367 = vsub.f32 %v362, %v366
  %v368 = vmul.f32 %v367, 1.442695
  %v369 = vpow.pop %v368
  %v370 = vsel %vm363, %v369, 0.0
  %371 = vadd.xlane.f32.xlu0 %v370
  %v372 = vpop.xlane.xlu0 %371
  %v373 = vpack.c.bf16 %v369, %v369
  %v374 = vpack.c.bf16 %v191, %v190
  %v375 = vpack.c.bf16 %v193, %v192
  %v376 = vpack.c.bf16 %v195, %v194
  %v377 = vpack.c.bf16 %v197, %v196
  %v379 = vsel %vm363, %v373, 0
  %381 = vmatprep.subr.bf16.mxu0 0
  %382 = vmatpush1.bf16.msra.mxu0 0
  %383 = vmatprep.subr.bf16.mxu0 0
  %384 = vmatpush1.bf16.msra.mxu0 0
  %385 = vmatprep.subr.bf16.mxu0 0
  %386 = vmatpush1.bf16.msra.mxu0 0
  %387 = vmatprep.subr.bf16.mxu0 0
  %388 = vmatpush1.bf16.msra.mxu0 0
  %389 = vmatprep.subr.bf16.mxu0 0
  %390 = vmatpush1.bf16.msra.mxu0 %v377
  %391 = vmatprep.subr.bf16.mxu0 0
  %392 = vmatpush1.bf16.msra.mxu0 %v376
  %393 = vmatprep.subr.bf16.mxu0 0
  %394 = vmatpush1.bf16.msra.mxu0 %v375
  %395 = vmatprep.subr.bf16.mxu0 0
  %396 = vmatpush1.bf16.msra.mxu0 %v374
  %397 = vmatprep.subr.bf16.mxu0 0
  %398 = vmatpush2.bf16.msra.mxu0 0
  %399 = vmatprep.subr.bf16.mxu0 0
  %400 = vmatpush2.bf16.msra.mxu0 0
  %401 = vmatprep.subr.bf16.mxu0 0
  %402 = vmatpush2.bf16.msra.mxu0 0
  %403 = vmatprep.subr.bf16.mxu0 0
  %404 = vmatpush2.bf16.msra.mxu0 0
  %405 = vmatprep.subr.bf16.mxu0 0
  %406 = vmatpush2.bf16.msra.mxu0 0
  %407 = vmatprep.subr.bf16.mxu0 0
  %408 = vmatpush2.bf16.msra.mxu0 0
  %409 = vmatprep.subr.bf16.mxu0 0
  %410 = vmatpush2.bf16.msra.mxu0 0
  %411 = vmatprep.subr.bf16.mxu0 0
  %412 = vmatpush2.bf16.msra.mxu0 0
  %413 = vmatprep.mubr.bf16.mxu0 0
  %414 = vmatmul.mubr.bf16.gmra.mxu0 %v379
  %v415 = vpop.f32.mrf.mxu0
  %v416 = vadd.f32 0.0, %v415
  %v417 = vpop.f32.mrf.mxu0
  %v418 = vpop.f32.mrf.mxu0
  %v419 = vpop.f32.mrf.mxu0
  %420 = vdwg.mxu0
  %v421 = vrcp.pop %v372
  %v422 = vmul.f32 %v416, %v421
  %v423 = vpack.c.bf16 %v422, %v422
  %v424 = vld [vmem:[%s4] sm:$0xf]
  %v425 = vld [vmem:[%s4 + $0x4] sm:$0xf]
  %v426 = vld [vmem:[%s4 + $0x8] sm:$0xf]
  %v427 = vld [vmem:[%s4 + $0xc] sm:$0xf]
  %v428 = vld [vmem:[%s4 + $0x10] sm:$0xf]
  %v429 = vld [vmem:[%s4 + $0x14] sm:$0xf]
  %v430 = vld [vmem:[%s4 + $0x18] sm:$0xf]
  %v431 = vld [vmem:[%s4 + $0x1c] sm:$0xf]
  %v432 = vld [vmem:[%s4 + $0x20] sm:$0xf]
  %v433 = vld [vmem:[%s4 + $0x24] sm:$0xf]
  %v434 = vld [vmem:[%s4 + $0x28] sm:$0xf]
  %v435 = vld [vmem:[%s4 + $0x2c] sm:$0xf]
  %v436 = vld [vmem:[%s4 + $0x30] sm:$0xf]
  %v437 = vld [vmem:[%s4 + $0x34] sm:$0xf]
  %v438 = vld [vmem:[%s4 + $0x38] sm:$0xf]
  %v439 = vld [vmem:[%s4 + $0x3c] sm:$0xf]
  %v440 = vlaneseq
  %v441 = vshrl.u32 %v440, 7
  %v442 = vsub.s32 3, %v441
  %v443 = vrot.slane %v42, %v442
  %v460 = vunpack.c.l.b16 %v424
  %v461 = vunpack.c.l.b16 %v425
  %v462 = vunpack.c.l.b16 %v426
  %v463 = vunpack.c.l.b16 %v427
  %v464 = vunpack.c.l.b16 %v428
  %v465 = vunpack.c.l.b16 %v429
  %v466 = vunpack.c.l.b16 %v430
  %v467 = vunpack.c.l.b16 %v431
  %v468 = vunpack.c.l.b16 %v432
  %v469 = vunpack.c.l.b16 %v433
  %v470 = vunpack.c.l.b16 %v434
  %v471 = vunpack.c.l.b16 %v435
  %v472 = vunpack.c.l.b16 %v436
  %v473 = vunpack.c.l.b16 %v437
  %v474 = vunpack.c.l.b16 %v438
  %v475 = vunpack.c.l.b16 %v439
  %v476 = vpack.c.b16 %v461, %v460
  %v477 = vpack.c.b16 %v463, %v462
  %v478 = vpack.c.b16 %v465, %v464
  %v479 = vpack.c.b16 %v467, %v466
  %v480 = vpack.c.b16 %v469, %v468
  %v481 = vpack.c.b16 %v471, %v470
  %v482 = vpack.c.b16 %v473, %v472
  %v483 = vpack.c.b16 %v475, %v474
  %492 = vmatprep.subr.bf16.mxu0 0
  %493 = vmatpush1.bf16.msra.mxu0 %v483
  %494 = vmatprep.subr.bf16.mxu0 0
  %495 = vmatpush1.bf16.msra.mxu0 %v482
  %496 = vmatprep.subr.bf16.mxu0 0
  %497 = vmatpush1.bf16.msra.mxu0 %v481
  %498 = vmatprep.subr.bf16.mxu0 0
  %499 = vmatpush1.bf16.msra.mxu0 %v480
  %500 = vmatprep.subr.bf16.mxu0 0
  %501 = vmatpush1.bf16.msra.mxu0 %v479
  %502 = vmatprep.subr.bf16.mxu0 0
  %503 = vmatpush1.bf16.msra.mxu0 %v478
  %504 = vmatprep.subr.bf16.mxu0 0
  %505 = vmatpush1.bf16.msra.mxu0 %v477
  %506 = vmatprep.subr.bf16.mxu0 0
  %507 = vmatpush1.bf16.msra.mxu0 %v476
  %508 = vmatprep.subr.bf16.mxu0 0
  %509 = vmatpush2.bf16.msra.mxu0 0
  %510 = vmatprep.subr.bf16.mxu0 0
  %511 = vmatpush2.bf16.msra.mxu0 0
  %512 = vmatprep.subr.bf16.mxu0 0
  %513 = vmatpush2.bf16.msra.mxu0 0
  %514 = vmatprep.subr.bf16.mxu0 0
  %515 = vmatpush2.bf16.msra.mxu0 0
  %516 = vmatprep.subr.bf16.mxu0 0
  %517 = vmatpush2.bf16.msra.mxu0 0
  %518 = vmatprep.subr.bf16.mxu0 0
  %519 = vmatpush2.bf16.msra.mxu0 0
  %520 = vmatprep.subr.bf16.mxu0 0
  %521 = vmatpush2.bf16.msra.mxu0 0
  %522 = vmatprep.subr.bf16.mxu0 0
  %523 = vmatpush2.bf16.msra.mxu0 0
  %524 = vmatprep.mubr.bf16.mxu0 0
  %525 = vmatmul.mubr.bf16.gmra.mxu0 %v423
  %v526 = vpop.f32.mrf.mxu0
  %v527 = vadd.f32 %v443, %v526
  %v528 = vpop.f32.mrf.mxu0
  %v529 = vpop.f32.mrf.mxu0
  %v530 = vpop.f32.mrf.mxu0
  %531 = vdwg.mxu0
  %v532 = vadd.f32 %v41, %v527
  %vm533 = vcmp.lt.s32.totalorder %v356, 32
  %v534 = vsel %vm533, %v532, 0.0
  %535 = vadd.xlane.f32.xlu0 %v534
  %v536 = vpop.xlane.xlu0 %535
  %v537 = vmul.f32 %v536, 0.03125
  %v538 = vsub.f32 %v532, %v537
  %v539 = vsel %vm533, %v538, 0.0
  %v540 = vmul.f32 %v539, %v539
  %541 = vadd.xlane.f32.xlu0 %v540
  %v542 = vpop.xlane.xlu0 %541
  %v543 = vmul.f32 %v542, 0.03125
  %v544 = vadd.f32 %v543, 1e-05
  %v545 = vrsqrt.pop %v544
  %v546 = vmul.f32 %v539, %v545
  %v547 = vlaneseq
  %v548 = vshrl.u32 %v547, 7
  %v549 = vsub.s32 4, %v548
  %v550 = vrot.slane %v42, %v549
  %v551 = vmul.f32 %v546, %v550
  %v552 = vlaneseq
  %v553 = vshrl.u32 %v552, 7
  %v554 = vsub.s32 5, %v553
  %v555 = vrot.slane %v42, %v554
  %v556 = vadd.f32 %v551, %v555
  %v557 = vpack.c.bf16 %v556, %v556
  %v558 = vld [vmem:[%s5] sm:$0xf]
  %v559 = vld [vmem:[%s5 + $0x4] sm:$0xf]
  %v560 = vld [vmem:[%s5 + $0x8] sm:$0xf]
  %v561 = vld [vmem:[%s5 + $0xc] sm:$0xf]
  %v562 = vld [vmem:[%s5 + $0x10] sm:$0xf]
  %v563 = vld [vmem:[%s5 + $0x14] sm:$0xf]
  %v564 = vld [vmem:[%s5 + $0x18] sm:$0xf]
  %v565 = vld [vmem:[%s5 + $0x1c] sm:$0xf]
  %v566 = vld [vmem:[%s5 + $0x20] sm:$0xf]
  %v567 = vld [vmem:[%s5 + $0x24] sm:$0xf]
  %v568 = vld [vmem:[%s5 + $0x28] sm:$0xf]
  %v569 = vld [vmem:[%s5 + $0x2c] sm:$0xf]
  %v570 = vld [vmem:[%s5 + $0x30] sm:$0xf]
  %v571 = vld [vmem:[%s5 + $0x34] sm:$0xf]
  %v572 = vld [vmem:[%s5 + $0x38] sm:$0xf]
  %v573 = vld [vmem:[%s5 + $0x3c] sm:$0xf]
  %v574 = vlaneseq
  %v575 = vshrl.u32 %v574, 7
  %v576 = vsub.s32 6, %v575
  %v577 = vrot.slane %v42, %v576
  %v594 = vunpack.c.l.b16 %v558
  %v595 = vunpack.c.l.b16 %v559
  %v596 = vunpack.c.l.b16 %v560
  %v597 = vunpack.c.l.b16 %v561
  %v598 = vunpack.c.l.b16 %v562
  %v599 = vunpack.c.l.b16 %v563
  %v600 = vunpack.c.l.b16 %v564
  %v601 = vunpack.c.l.b16 %v565
  %v602 = vunpack.c.l.b16 %v566
  %v603 = vunpack.c.l.b16 %v567
  %v604 = vunpack.c.l.b16 %v568
  %v605 = vunpack.c.l.b16 %v569
  %v606 = vunpack.c.l.b16 %v570
  %v607 = vunpack.c.l.b16 %v571
  %v608 = vunpack.c.l.b16 %v572
  %v609 = vunpack.c.l.b16 %v573
  %v610 = vpack.c.b16 %v595, %v594
  %v611 = vpack.c.b16 %v597, %v596
  %v612 = vpack.c.b16 %v599, %v598
  %v613 = vpack.c.b16 %v601, %v600
  %v614 = vpack.c.b16 %v603, %v602
  %v615 = vpack.c.b16 %v605, %v604
  %v616 = vpack.c.b16 %v607, %v606
  %v617 = vpack.c.b16 %v609, %v608
  %626 = vmatprep.subr.bf16.mxu0 0
  %627 = vmatpush1.bf16.msra.mxu0 %v617
  %628 = vmatprep.subr.bf16.mxu0 0
  %629 = vmatpush1.bf16.msra.mxu0 %v616
  %630 = vmatprep.subr.bf16.mxu0 0
  %631 = vmatpush1.bf16.msra.mxu0 %v615
  %632 = vmatprep.subr.bf16.mxu0 0
  %633 = vmatpush1.bf16.msra.mxu0 %v614
  %634 = vmatprep.subr.bf16.mxu0 0
  %635 = vmatpush1.bf16.msra.mxu0 %v613
  %636 = vmatprep.subr.bf16.mxu0 0
  %637 = vmatpush1.bf16.msra.mxu0 %v612
  %638 = vmatprep.subr.bf16.mxu0 0
  %639 = vmatpush1.bf16.msra.mxu0 %v611
  %640 = vmatprep.subr.bf16.mxu0 0
  %641 = vmatpush1.bf16.msra.mxu0 %v610
  %642 = vmatprep.subr.bf16.mxu0 0
  %643 = vmatpush2.bf16.msra.mxu0 0
  %644 = vmatprep.subr.bf16.mxu0 0
  %645 = vmatpush2.bf16.msra.mxu0 0
  %646 = vmatprep.subr.bf16.mxu0 0
  %647 = vmatpush2.bf16.msra.mxu0 0
  %648 = vmatprep.subr.bf16.mxu0 0
  %649 = vmatpush2.bf16.msra.mxu0 0
  %650 = vmatprep.subr.bf16.mxu0 0
  %651 = vmatpush2.bf16.msra.mxu0 0
  %652 = vmatprep.subr.bf16.mxu0 0
  %653 = vmatpush2.bf16.msra.mxu0 0
  %654 = vmatprep.subr.bf16.mxu0 0
  %655 = vmatpush2.bf16.msra.mxu0 0
  %656 = vmatprep.subr.bf16.mxu0 0
  %657 = vmatpush2.bf16.msra.mxu0 0
  %658 = vmatprep.mubr.bf16.mxu0 0
  %659 = vmatmul.mubr.bf16.gmra.mxu0 %v557
  %v660 = vpop.f32.mrf.mxu0
  %v661 = vadd.f32 %v577, %v660
  %v662 = vpop.f32.mrf.mxu0
  %v663 = vpop.f32.mrf.mxu0
  %v664 = vpop.f32.mrf.mxu0
  %665 = vdwg.mxu0
  %v666 = vmul.f32 %v661, 0.5
  %v667 = vmul.f32 %v661, 0.044715
  %v668 = vmul.f32 %v667, %v661
  %v669 = vmul.f32 %v668, %v661
  %v670 = vadd.f32 %v661, %v669
  %v671 = vmul.f32 %v670, 0.7978846
  %v672 = vtanh.pop %v671
  %v673 = vadd.f32 %v672, 1.0
  %v674 = vmul.f32 %v666, %v673
  %v675 = vpack.c.bf16 %v674, %v674
  %v676 = vld [vmem:[%s6] sm:$0xf]
  %v677 = vld [vmem:[%s6 + $0x4] sm:$0xf]
  %v678 = vld [vmem:[%s6 + $0x8] sm:$0xf]
  %v679 = vld [vmem:[%s6 + $0xc] sm:$0xf]
  %v680 = vld [vmem:[%s6 + $0x10] sm:$0xf]
  %v681 = vld [vmem:[%s6 + $0x14] sm:$0xf]
  %v682 = vld [vmem:[%s6 + $0x18] sm:$0xf]
  %v683 = vld [vmem:[%s6 + $0x1c] sm:$0xf]
  %v684 = vld [vmem:[%s6 + $0x20] sm:$0xf]
  %v685 = vld [vmem:[%s6 + $0x24] sm:$0xf]
  %v686 = vld [vmem:[%s6 + $0x28] sm:$0xf]
  %v687 = vld [vmem:[%s6 + $0x2c] sm:$0xf]
  %v688 = vld [vmem:[%s6 + $0x30] sm:$0xf]
  %v689 = vld [vmem:[%s6 + $0x34] sm:$0xf]
  %v690 = vld [vmem:[%s6 + $0x38] sm:$0xf]
  %v691 = vld [vmem:[%s6 + $0x3c] sm:$0xf]
  %v692 = vlaneseq
  %v693 = vshrl.u32 %v692, 7
  %v694 = vsub.s32 7, %v693
  %v695 = vrot.slane %v42, %v694
  %v712 = vunpack.c.l.b16 %v676
  %v713 = vunpack.c.l.b16 %v677
  %v714 = vunpack.c.l.b16 %v678
  %v715 = vunpack.c.l.b16 %v679
  %v716 = vunpack.c.l.b16 %v680
  %v717 = vunpack.c.l.b16 %v681
  %v718 = vunpack.c.l.b16 %v682
  %v719 = vunpack.c.l.b16 %v683
  %v720 = vunpack.c.l.b16 %v684
  %v721 = vunpack.c.l.b16 %v685
  %v722 = vunpack.c.l.b16 %v686
  %v723 = vunpack.c.l.b16 %v687
  %v724 = vunpack.c.l.b16 %v688
  %v725 = vunpack.c.l.b16 %v689
  %v726 = vunpack.c.l.b16 %v690
  %v727 = vunpack.c.l.b16 %v691
  %v728 = vpack.c.b16 %v713, %v712
  %v729 = vpack.c.b16 %v715, %v714
  %v730 = vpack.c.b16 %v717, %v716
  %v731 = vpack.c.b16 %v719, %v718
  %v732 = vpack.c.b16 %v721, %v720
  %v733 = vpack.c.b16 %v723, %v722
  %v734 = vpack.c.b16 %v725, %v724
  %v735 = vpack.c.b16 %v727, %v726
  %744 = vmatprep.subr.bf16.mxu0 0
  %745 = vmatpush1.bf16.msra.mxu0 %v735
  %746 = vmatprep.subr.bf16.mxu0 0
  %747 = vmatpush1.bf16.msra.mxu0 %v734
  %748 = vmatprep.subr.bf16.mxu0 0
  %749 = vmatpush1.bf16.msra.mxu0 %v733
  %750 = vmatprep.subr.bf16.mxu0 0
  %751 = vmatpush1.bf16.msra.mxu0 %v732
  %752 = vmatprep.subr.bf16.mxu0 0
  %753 = vmatpush1.bf16.msra.mxu0 %v731
  %754 = vmatprep.subr.bf16.mxu0 0
  %755 = vmatpush1.bf16.msra.mxu0 %v730
  %756 = vmatprep.subr.bf16.mxu0 0
  %757 = vmatpush1.bf16.msra.mxu0 %v729
  %758 = vmatprep.subr.bf16.mxu0 0
  %759 = vmatpush1.bf16.msra.mxu0 %v728
  %760 = vmatprep.subr.bf16.mxu0 0
  %761 = vmatpush2.bf16.msra.mxu0 0
  %762 = vmatprep.subr.bf16.mxu0 0
  %763 = vmatpush2.bf16.msra.mxu0 0
  %764 = vmatprep.subr.bf16.mxu0 0
  %765 = vmatpush2.bf16.msra.mxu0 0
  %766 = vmatprep.subr.bf16.mxu0 0
  %767 = vmatpush2.bf16.msra.mxu0 0
  %768 = vmatprep.subr.bf16.mxu0 0
  %769 = vmatpush2.bf16.msra.mxu0 0
  %770 = vmatprep.subr.bf16.mxu0 0
  %771 = vmatpush2.bf16.msra.mxu0 0
  %772 = vmatprep.subr.bf16.mxu0 0
  %773 = vmatpush2.bf16.msra.mxu0 0
  %774 = vmatprep.subr.bf16.mxu0 0
  %775 = vmatpush2.bf16.msra.mxu0 0
  %776 = vmatprep.mubr.bf16.mxu0 0
  %777 = vmatmul.mubr.bf16.gmra.mxu0 %v675
  %v778 = vpop.f32.mrf.mxu0
  %v779 = vadd.f32 %v695, %v778
  %v780 = vpop.f32.mrf.mxu0
  %v781 = vpop.f32.mrf.mxu0
  %v782 = vpop.f32.mrf.mxu0
  %783 = vdwg.mxu0
  %v784 = vadd.f32 %v556, %v779
  %v785 = vsel %vm533, %v784, 0.0
  %786 = vadd.xlane.f32.xlu0 %v785
  %v787 = vpop.xlane.xlu0 %786
  %v788 = vmul.f32 %v787, 0.03125
  %v789 = vsub.f32 %v784, %v788
  %v790 = vsel %vm533, %v789, 0.0
  %v791 = vmul.f32 %v790, %v790
  %792 = vadd.xlane.f32.xlu0 %v791
  %v793 = vpop.xlane.xlu0 %792
  %v794 = vmul.f32 %v793, 0.03125
  %v795 = vadd.f32 %v794, 1e-05
  %v796 = vrsqrt.pop %v795
  %v797 = vmul.f32 %v790, %v796
  %v798 = vlaneseq
  %v799 = vshrl.u32 %v798, 7
  %v800 = vsub.s32 0, %v799
  %v801 = vrot.slane %v43, %v800
  %v802 = vmul.f32 %v797, %v801
  %v803 = vlaneseq
  %v804 = vshrl.u32 %v803, 7
  %v805 = vsub.s32 1, %v804
  %v806 = vrot.slane %v43, %v805
  %v807 = vadd.f32 %v802, %v806
  %v808 = vpack.c.bf16 %v807, %v807
  %v809 = vld [vmem:[%s7] sm:$0xf]
  %v810 = vld [vmem:[%s7 + $0x4] sm:$0xf]
  %v811 = vld [vmem:[%s7 + $0x8] sm:$0xf]
  %v812 = vld [vmem:[%s7 + $0xc] sm:$0xf]
  %v813 = vld [vmem:[%s7 + $0x10] sm:$0xf]
  %v814 = vld [vmem:[%s7 + $0x14] sm:$0xf]
  %v815 = vld [vmem:[%s7 + $0x18] sm:$0xf]
  %v816 = vld [vmem:[%s7 + $0x1c] sm:$0xf]
  %v817 = vld [vmem:[%s7 + $0x20] sm:$0xf]
  %v818 = vld [vmem:[%s7 + $0x24] sm:$0xf]
  %v819 = vld [vmem:[%s7 + $0x28] sm:$0xf]
  %v820 = vld [vmem:[%s7 + $0x2c] sm:$0xf]
  %v821 = vld [vmem:[%s7 + $0x30] sm:$0xf]
  %v822 = vld [vmem:[%s7 + $0x34] sm:$0xf]
  %v823 = vld [vmem:[%s7 + $0x38] sm:$0xf]
  %v824 = vld [vmem:[%s7 + $0x3c] sm:$0xf]
  %v825 = vlaneseq
  %v826 = vshrl.u32 %v825, 7
  %v827 = vsub.s32 2, %v826
  %v828 = vrot.slane %v43, %v827
  %v845 = vunpack.c.l.b16 %v809
  %v846 = vunpack.c.l.b16 %v810
  %v847 = vunpack.c.l.b16 %v811
  %v848 = vunpack.c.l.b16 %v812
  %v849 = vunpack.c.l.b16 %v813
  %v850 = vunpack.c.l.b16 %v814
  %v851 = vunpack.c.l.b16 %v815
  %v852 = vunpack.c.l.b16 %v816
  %v853 = vunpack.c.l.b16 %v817
  %v854 = vunpack.c.l.b16 %v818
  %v855 = vunpack.c.l.b16 %v819
  %v856 = vunpack.c.l.b16 %v820
  %v857 = vunpack.c.l.b16 %v821
  %v858 = vunpack.c.l.b16 %v822
  %v859 = vunpack.c.l.b16 %v823
  %v860 = vunpack.c.l.b16 %v824
  %v861 = vpack.c.b16 %v846, %v845
  %v862 = vpack.c.b16 %v848, %v847
  %v863 = vpack.c.b16 %v850, %v849
  %v864 = vpack.c.b16 %v852, %v851
  %v865 = vpack.c.b16 %v854, %v853
  %v866 = vpack.c.b16 %v856, %v855
  %v867 = vpack.c.b16 %v858, %v857
  %v868 = vpack.c.b16 %v860, %v859
  %877 = vmatprep.subr.bf16.mxu0 0
  %878 = vmatpush1.bf16.msra.mxu0 %v868
  %879 = vmatprep.subr.bf16.mxu0 0
  %880 = vmatpush1.bf16.msra.mxu0 %v867
  %881 = vmatprep.subr.bf16.mxu0 0
  %882 = vmatpush1.bf16.msra.mxu0 %v866
  %883 = vmatprep.subr.bf16.mxu0 0
  %884 = vmatpush1.bf16.msra.mxu0 %v865
  %885 = vmatprep.subr.bf16.mxu0 0
  %886 = vmatpush1.bf16.msra.mxu0 %v864
  %887 = vmatprep.subr.bf16.mxu0 0
  %888 = vmatpush1.bf16.msra.mxu0 %v863
  %889 = vmatprep.subr.bf16.mxu0 0
  %890 = vmatpush1.bf16.msra.mxu0 %v862
  %891 = vmatprep.subr.bf16.mxu0 0
  %892 = vmatpush1.bf16.msra.mxu0 %v861
  %893 = vmatprep.subr.bf16.mxu0 0
  %894 = vmatpush2.bf16.msra.mxu0 0
  %895 = vmatprep.subr.bf16.mxu0 0
  %896 = vmatpush2.bf16.msra.mxu0 0
  %897 = vmatprep.subr.bf16.mxu0 0
  %898 = vmatpush2.bf16.msra.mxu0 0
  %899 = vmatprep.subr.bf16.mxu0 0
  %900 = vmatpush2.bf16.msra.mxu0 0
  %901 = vmatprep.subr.bf16.mxu0 0
  %902 = vmatpush2.bf16.msra.mxu0 0
  %903 = vmatprep.subr.bf16.mxu0 0
  %904 = vmatpush2.bf16.msra.mxu0 0
  %905 = vmatprep.subr.bf16.mxu0 0
  %906 = vmatpush2.bf16.msra.mxu0 0
  %907 = vmatprep.subr.bf16.mxu0 0
  %908 = vmatpush2.bf16.msra.mxu0 0
  %909 = vmatprep.mubr.bf16.mxu0 0
  %910 = vmatmul.mubr.bf16.gmra.mxu0 %v808
  %v911 = vpop.f32.mrf.mxu0
  %v912 = vadd.f32 %v828, %v911
  %v913 = vpop.f32.mrf.mxu0
  %v914 = vpop.f32.mrf.mxu0
  %v915 = vpop.f32.mrf.mxu0
  %916 = vdwg.mxu0
  %917 = vst [vmem:[%s9] sm:$0xff] %v912
  // Predicated region
  $region38: #{finetune_forward.1} parent=0 // pred_check
    _
  $region39: #{finetune_forward.1} parent=0 // pred_check_branch
    %919 = sbr.rel (0) target = $region41
  $region40: #{finetune_forward.1} parent=0 // pred_region
    _
  $region41: #{finetune_forward.1} parent=0 // pred_fallthru
    _
  // Predicated region
  $region42: #{finetune_forward.1} parent=0 // pred_check
    _
  $region43: #{finetune_forward.1} parent=0 // pred_check_branch
    %921 = sbr.rel (0) target = $region45
  $region44: #{finetune_forward.1} parent=0 // pred_region
    _
  $region45: #{finetune_forward.1} parent=0 // pred_fallthru
    _

</llo_original>
